<compile_context>
chip_gen: v7x
topology: tpu7x:2x2x1
jax: 0.10.0
libtpu: 0.0.40
codegen_flags: <defaults>
</compile_context>

<pallas_src>
import functools

import jax
import jax.numpy as jnp
from jax.experimental import pallas as pl
from jax.experimental.pallas import tpu as pltpu


def _cross_channel_kernel(x_ref,
                          w1i_ref, b1i_ref, w2i_ref, b2i_ref,
                          w1o_ref, b1o_ref, w2o_ref, b2o_ref,
                          o_ref, *, tb, c, hw, matmul_dtype):
    x3 = x_ref[...]                               # (tb, c, hw), f32
    x2 = x3.reshape(tb * c, hw)                   # stack batch along MXU M dim

    def mm(a, b):                                 # MXU matmul, f32 accumulate
        return jnp.dot(a.astype(matmul_dtype), b.astype(matmul_dtype),
                       preferred_element_type=jnp.float32)

    # fc_in: Conv1d(hw -> bneck) + ReLU + Conv1d(bneck -> hw), weights pre-transposed.
    h1 = jnp.maximum(mm(x2, w1i_ref[...]) + b1i_ref[...], 0.0)      # (tb*c, bneck)
    xv2 = mm(h1, w2i_ref[...]) + b2i_ref[...]                       # (tb*c, hw)
    xv2_3 = xv2.reshape(tb, c, hw)

    # Per-channel mean over hw, pairwise score, softmax.  score is symmetric,
    # so softmax over the last axis here equals the transpose of torch's
    # softmax(dim=1) -- exactly what the (c, hw)-layout bmm below needs.
    m = jnp.mean(xv2_3, axis=2)                                     # (tb, c)
    score = -((m[:, :, None] - m[:, None, :]) ** 2)                 # (tb, c, c)
    score = score - jnp.max(score, axis=2, keepdims=True)
    e = jnp.exp(score)
    attn = e * pl.reciprocal(jnp.sum(e, axis=2, keepdims=True), approx=True)

    # torch.bmm(x_v, attn) in (c, hw) layout: mixed[t] = attn[t] @ xv2[t]
    mixed = jnp.einsum("tij,tjp->tip",
                       attn.astype(matmul_dtype), xv2_3.astype(matmul_dtype),
                       preferred_element_type=jnp.float32)          # (tb, c, hw)
    mixed2 = mixed.reshape(tb * c, hw)

    # fc_out: Conv1d(hw -> bneck) + ReLU + Conv1d(bneck -> hw)
    h2 = jnp.maximum(mm(mixed2, w1o_ref[...]) + b1o_ref[...], 0.0)  # (tb*c, bneck)
    out2 = mm(h2, w2o_ref[...]) + b2o_ref[...]                      # (tb*c, hw)

    # Residual (from the original f32 tile) + ReLU; lane-dense store along hw.
    out = jnp.maximum(x2 + out2, 0.0)
    o_ref[...] = out.reshape(tb, c, hw).astype(o_ref.dtype)


def _pick_tb(bt, c, target_m=256):
    """Largest divisor of bt with tb*c <= ~target_m, keeping >= 2 grid steps
    when possible (so both v7x TensorCores get work)."""
    want = max(1, min(bt, -(-target_m // c)))
    tb = 1
    for d in range(1, bt + 1):
        if bt % d == 0 and d <= want:
            tb = d
    if bt // tb < 2 and bt >= 2:
        for d in range(bt // 2, 0, -1):
            if bt % d == 0:
                tb = d
                break
    return tb


def cross_channel_forward(x, params, *, tb=None, matmul_dtype=jnp.float32):
    """x: (bt, c, h, w) float32; params: torch-convention fc_in/fc_out weights."""
    bt, c, h, w = x.shape
    hw = h * w
    x_flat = x.reshape(bt, c, hw)

    w1i, b1i, w2i, b2i = params["w1i"], params["b1i"], params["w2i"], params["b2i"]
    w1o, b1o, w2o, b2o = params["w1o"], params["b1o"], params["w2o"], params["b2o"]
    bneck = w1i.shape[0]
    assert w1i.shape == (bneck, hw), \
        "Conv1d in_channels must equal h*w (as in the torch module)"

    if tb is None:
        tb = _pick_tb(bt, c)
    assert bt % tb == 0
    grid = (bt // tb,)

    # One-time weight relayout: transposed (matmul-ready) matrices, row biases.
    wt = lambda m: m.T.astype(matmul_dtype)
    w1iT, w2iT = wt(w1i), wt(w2i)                            # (hw, bneck), (bneck, hw)
    w1oT, w2oT = wt(w1o), wt(w2o)
    b1i_r, b2i_r = b1i.reshape(1, -1), b2i.reshape(1, -1)    # (1, bneck), (1, hw)
    b1o_r, b2o_r = b1o.reshape(1, -1), b2o.reshape(1, -1)

    full = lambda shape: pl.BlockSpec(shape, lambda b: (0, 0))

    kernel = functools.partial(_cross_channel_kernel, tb=tb, c=c, hw=hw,
                               matmul_dtype=matmul_dtype)

    out_flat = pl.pallas_call(
        kernel,
        out_shape=jax.ShapeDtypeStruct((bt, c, hw), x.dtype),
        grid_spec=pltpu.PrefetchScalarGridSpec(
            num_scalar_prefetch=0,
            grid=grid,
            in_specs=[
                pl.BlockSpec((tb, c, hw), lambda b: (b, 0, 0)),      # x
                full((hw, bneck)), full((1, bneck)),                  # fc_in conv1
                full((bneck, hw)), full((1, hw)),                     # fc_in conv2
                full((hw, bneck)), full((1, bneck)),                  # fc_out conv1
                full((bneck, hw)), full((1, hw)),                     # fc_out conv2
            ],
            out_specs=pl.BlockSpec((tb, c, hw), lambda b: (b, 0, 0)),
        ),
        compiler_params=pltpu.CompilerParams(
            dimension_semantics=("parallel",)),
    )(x_flat, w1iT, b1i_r, w2iT, b2i_r, w1oT, b1o_r, w2oT, b2o_r)

    # TODO(synk): for very large c*hw (v7x has only 64 MiB VMEM), add an inner
    # hw-tiling loop (emit_pipeline / extra grid axis) instead of the full slab.
    return out_flat.reshape(bt, c, h, w)


def init_params(key, in_channels):
    """Deterministic synthetic init. Conv1d kernel size = 1, so weights are 2D."""
    bneck = in_channels // 8
    ks = jax.random.split(key, 8)
    scale_in = 1.0 / jnp.sqrt(in_channels)
    scale_bn = 1.0 / jnp.sqrt(max(bneck, 1))
    return {
        "w1i": jax.random.normal(ks[0], (bneck, in_channels), jnp.float32) * scale_in,
        "b1i": jax.random.normal(ks[1], (bneck, 1), jnp.float32) * 0.1,
        "w2i": jax.random.normal(ks[2], (in_channels, bneck), jnp.float32) * scale_bn,
        "b2i": jax.random.normal(ks[3], (in_channels, 1), jnp.float32) * 0.1,
        "w1o": jax.random.normal(ks[4], (bneck, in_channels), jnp.float32) * scale_in,
        "b1o": jax.random.normal(ks[5], (bneck, 1), jnp.float32) * 0.1,
        "w2o": jax.random.normal(ks[6], (in_channels, bneck), jnp.float32) * scale_bn,
        "b2o": jax.random.normal(ks[7], (in_channels, 1), jnp.float32) * 0.1,
    }


def reference_forward(x, params):
    """Pure-JAX replica of the torch forward, for correctness checking."""
    P = jax.lax.Precision.HIGHEST
    bt, c, h, w = x.shape
    residual = x
    xf = x.reshape(bt, c, h * w)
    xv = jnp.transpose(xf, (0, 2, 1))                                # (bt, hw, c)
    h1 = jnp.maximum(
        jnp.einsum("oi,bil->bol", params["w1i"], xv, precision=P) + params["b1i"][None], 0.0)
    xv2 = jnp.einsum("oi,bil->bol", params["w2i"], h1, precision=P) + params["b2i"][None]
    m = jnp.mean(xv2, axis=1)[:, None, :]                            # (bt, 1, c)
    score = -((m - jnp.transpose(m, (0, 2, 1))) ** 2)                # (bt, c, c)
    attn = jax.nn.softmax(score, axis=1)
    mixed = jnp.einsum("bpc,bcd->bpd", xv2, attn, precision=P)       # (bt, hw, c)
    h2 = jnp.maximum(
        jnp.einsum("oi,bil->bol", params["w1o"], mixed, precision=P) + params["b1o"][None], 0.0)
    out2 = jnp.einsum("oi,bil->bol", params["w2o"], h2, precision=P) + params["b2o"][None]
    out = jnp.transpose(out2, (0, 2, 1)).reshape(bt, c, h, w)
    return jnp.maximum(residual + out, 0.0)


if __name__ == "__main__":
    # Shapes: the torch module requires h*w == in_channels (constructor arg).
    # c = 8 keeps in-kernel (tb, c, hw) <-> (tb*c, hw) reshapes sublane-aligned;
    # hw = 256 keeps the output stores lane-dense.
    bt, c, hspatial, wspatial = 4, 8, 16, 16
    in_channels = hspatial * wspatial  # 256 -> bottleneck = 32

    key = jax.random.PRNGKey(0)
    kx, kp = jax.random.split(key)
    x = jax.random.normal(kx, (bt, c, hspatial, wspatial), jnp.float32)
    params = init_params(kp, in_channels)

    ref = jax.block_until_ready(reference_forward(x, params))

    # f32 path (default; right choice on v5e).
    out = jax.block_until_ready(cross_channel_forward(x, params))
    assert out.shape == (bt, c, hspatial, wspatial)
    max_err = float(jnp.max(jnp.abs(out - ref)))
    assert jnp.allclose(out, ref, atol=2e-3, rtol=2e-3), \
        f"f32 kernel mismatch vs pure-JAX reference (max abs err {max_err})"

    # bf16-MXU path (v6e/v7x): operands bf16, f32 accumulation + f32 elementwise.
    out_bf16 = jax.block_until_ready(
        cross_channel_forward(x, params, matmul_dtype=jnp.bfloat16))
    rel_l2 = float(jnp.linalg.norm(out_bf16 - ref) /
                   (jnp.linalg.norm(ref) + 1e-12))
    assert rel_l2 < 5e-2, f"bf16 kernel drifted too far (rel L2 {rel_l2})"

    print("KERNEL_OK")
</pallas_src>

<mosaic_0001>
module attributes {stable_mosaic.version = 11 : i64} {
  func.func @_cross_channel_kernel(%arg0: i32, %arg1: memref<2x8x256xf32, #tpu.memory_space<vmem>>, %arg2: memref<256x32xf32, #tpu.memory_space<vmem>>, %arg3: memref<1x32xf32, #tpu.memory_space<vmem>>, %arg4: memref<32x256xf32, #tpu.memory_space<vmem>>, %arg5: memref<1x256xf32, #tpu.memory_space<vmem>>, %arg6: memref<256x32xf32, #tpu.memory_space<vmem>>, %arg7: memref<1x32xf32, #tpu.memory_space<vmem>>, %arg8: memref<32x256xf32, #tpu.memory_space<vmem>>, %arg9: memref<1x256xf32, #tpu.memory_space<vmem>>, %arg10: memref<2x8x256xf32, #tpu.memory_space<vmem>>) attributes {dimension_semantics = [#tpu.dimension_semantics<parallel>], iteration_bounds = array<i64: 2>, scalar_prefetch = 0 : i64, scratch_operands = 0 : i64, tpu.core_type = #tpu.core_type<tc>, window_params = [{transform_indices = @transform_0, window_bounds = array<i64: 2, 8, 256>}, {pipeline_mode = #tpu.pipeline_mode<synchronous>, transform_indices = @transform_1, window_bounds = array<i64: 256, 32>}, {pipeline_mode = #tpu.pipeline_mode<synchronous>, transform_indices = @transform_2, window_bounds = array<i64: 1, 32>}, {pipeline_mode = #tpu.pipeline_mode<synchronous>, transform_indices = @transform_3, window_bounds = array<i64: 32, 256>}, {pipeline_mode = #tpu.pipeline_mode<synchronous>, transform_indices = @transform_4, window_bounds = array<i64: 1, 256>}, {pipeline_mode = #tpu.pipeline_mode<synchronous>, transform_indices = @transform_5, window_bounds = array<i64: 256, 32>}, {pipeline_mode = #tpu.pipeline_mode<synchronous>, transform_indices = @transform_6, window_bounds = array<i64: 1, 32>}, {pipeline_mode = #tpu.pipeline_mode<synchronous>, transform_indices = @transform_7, window_bounds = array<i64: 32, 256>}, {pipeline_mode = #tpu.pipeline_mode<synchronous>, transform_indices = @transform_8, window_bounds = array<i64: 1, 256>}, {transform_indices = @transform_9, window_bounds = array<i64: 2, 8, 256>}]} {
    %c0 = arith.constant 0 : index
    %c0_0 = arith.constant 0 : index
    %c0_1 = arith.constant 0 : index
    %0 = vector.load %arg1[%c0, %c0_0, %c0_1] : memref<2x8x256xf32, #tpu.memory_space<vmem>>, vector<2x8x256xf32>
    %1 = vector.shape_cast %0 : vector<2x8x256xf32> to vector<16x256xf32>
    %c0_2 = arith.constant 0 : index
    %c0_3 = arith.constant 0 : index
    %2 = vector.load %arg2[%c0_2, %c0_3] : memref<256x32xf32, #tpu.memory_space<vmem>>, vector<256x32xf32>
    %cst = arith.constant dense<0.000000e+00> : vector<16x32xf32>
    %3 = tpu.matmul %1, %2, %cst {dimension_numbers = #tpu.dot_dimension_numbers<[1], [0], [0], [1], [0, 0, 1, 1], [], []>} : vector<16x256xf32>, vector<256x32xf32>, vector<16x32xf32> -> vector<16x32xf32>
    %c0_4 = arith.constant 0 : index
    %c0_5 = arith.constant 0 : index
    %4 = vector.load %arg3[%c0_4, %c0_5] : memref<1x32xf32, #tpu.memory_space<vmem>>, vector<1x32xf32>
    %5 = vector.broadcast %4 : vector<1x32xf32> to vector<16x32xf32>
    %6 = arith.addf %3, %5 : vector<16x32xf32>
    %cst_6 = arith.constant 0.000000e+00 : f32
    %7 = vector.broadcast %cst_6 : f32 to vector<16x32xf32>
    %8 = arith.maximumf %6, %7 : vector<16x32xf32>
    %c0_7 = arith.constant 0 : index
    %c0_8 = arith.constant 0 : index
    %9 = vector.load %arg4[%c0_7, %c0_8] : memref<32x256xf32, #tpu.memory_space<vmem>>, vector<32x256xf32>
    %cst_9 = arith.constant dense<0.000000e+00> : vector<16x256xf32>
    %10 = tpu.matmul %8, %9, %cst_9 {dimension_numbers = #tpu.dot_dimension_numbers<[1], [0], [0], [1], [0, 0, 1, 1], [], []>} : vector<16x32xf32>, vector<32x256xf32>, vector<16x256xf32> -> vector<16x256xf32>
    %c0_10 = arith.constant 0 : index
    %c0_11 = arith.constant 0 : index
    %11 = vector.load %arg5[%c0_10, %c0_11] : memref<1x256xf32, #tpu.memory_space<vmem>>, vector<1x256xf32>
    %12 = vector.broadcast %11 : vector<1x256xf32> to vector<16x256xf32>
    %13 = arith.addf %10, %12 : vector<16x256xf32>
    %14 = vector.shape_cast %13 : vector<16x256xf32> to vector<2x8x256xf32>
    %cst_12 = arith.constant dense<0.000000e+00> : vector<2x8xf32>
    %15 = vector.multi_reduction <add>, %14, %cst_12 [2] : vector<2x8x256xf32> to vector<2x8xf32>
    %cst_13 = arith.constant 2.560000e+02 : f32
    %16 = vector.broadcast %cst_13 : f32 to vector<2x8xf32>
    %17 = arith.divf %15, %16 : vector<2x8xf32>
    %18 = vector.shape_cast %17 : vector<2x8xf32> to vector<2x8x1xf32>
    %19 = vector.shape_cast %17 : vector<2x8xf32> to vector<2x1x8xf32>
    %20 = vector.broadcast %18 : vector<2x8x1xf32> to vector<2x8x8xf32>
    %21 = vector.broadcast %19 : vector<2x1x8xf32> to vector<2x8x8xf32>
    %22 = arith.subf %20, %21 : vector<2x8x8xf32>
    %23 = arith.mulf %22, %22 : vector<2x8x8xf32>
    %cst_14 = arith.constant 0.000000e+00 : f32
    %24 = vector.broadcast %cst_14 : f32 to vector<2x8x8xf32>
    %25 = arith.subf %24, %23 : vector<2x8x8xf32>
    %cst_15 = arith.constant dense<0xFF800000> : vector<2x8xf32>
    %26 = vector.multi_reduction <maximumf>, %25, %cst_15 [2] : vector<2x8x8xf32> to vector<2x8xf32>
    %27 = vector.shape_cast %26 : vector<2x8xf32> to vector<2x8x1xf32>
    %28 = vector.broadcast %27 : vector<2x8x1xf32> to vector<2x8x8xf32>
    %29 = arith.subf %25, %28 : vector<2x8x8xf32>
    %30 = math.exp %29 : vector<2x8x8xf32>
    %cst_16 = arith.constant dense<0.000000e+00> : vector<2x8xf32>
    %31 = vector.multi_reduction <add>, %30, %cst_16 [2] : vector<2x8x8xf32> to vector<2x8xf32>
    %32 = vector.shape_cast %31 : vector<2x8xf32> to vector<2x8x1xf32>
    %33 = tpu.reciprocal %32 {approx = true} : vector<2x8x1xf32> -> vector<2x8x1xf32>
    %34 = vector.broadcast %33 : vector<2x8x1xf32> to vector<2x8x8xf32>
    %35 = arith.mulf %30, %34 : vector<2x8x8xf32>
    "tpu.trace_start"() <{level = 10 : i32, message = "tij,tjp->tip"}> : () -> ()
    %cst_17 = arith.constant dense<0.000000e+00> : vector<2x8x256xf32>
    %36 = tpu.matmul %35, %14, %cst_17 {dimension_numbers = #tpu.dot_dimension_numbers<[2], [1], [1], [2], [0, 0, 0, 1, 1, 2], [0], [0]>} : vector<2x8x8xf32>, vector<2x8x256xf32>, vector<2x8x256xf32> -> vector<2x8x256xf32>
    "tpu.trace_stop"() : () -> ()
    %37 = vector.shape_cast %36 : vector<2x8x256xf32> to vector<16x256xf32>
    %c0_18 = arith.constant 0 : index
    %c0_19 = arith.constant 0 : index
    %38 = vector.load %arg6[%c0_18, %c0_19] : memref<256x32xf32, #tpu.memory_space<vmem>>, vector<256x32xf32>
    %cst_20 = arith.constant dense<0.000000e+00> : vector<16x32xf32>
    %39 = tpu.matmul %37, %38, %cst_20 {dimension_numbers = #tpu.dot_dimension_numbers<[1], [0], [0], [1], [0, 0, 1, 1], [], []>} : vector<16x256xf32>, vector<256x32xf32>, vector<16x32xf32> -> vector<16x32xf32>
    %c0_21 = arith.constant 0 : index
    %c0_22 = arith.constant 0 : index
    %40 = vector.load %arg7[%c0_21, %c0_22] : memref<1x32xf32, #tpu.memory_space<vmem>>, vector<1x32xf32>
    %41 = vector.broadcast %40 : vector<1x32xf32> to vector<16x32xf32>
    %42 = arith.addf %39, %41 : vector<16x32xf32>
    %cst_23 = arith.constant 0.000000e+00 : f32
    %43 = vector.broadcast %cst_23 : f32 to vector<16x32xf32>
    %44 = arith.maximumf %42, %43 : vector<16x32xf32>
    %c0_24 = arith.constant 0 : index
    %c0_25 = arith.constant 0 : index
    %45 = vector.load %arg8[%c0_24, %c0_25] : memref<32x256xf32, #tpu.memory_space<vmem>>, vector<32x256xf32>
    %cst_26 = arith.constant dense<0.000000e+00> : vector<16x256xf32>
    %46 = tpu.matmul %44, %45, %cst_26 {dimension_numbers = #tpu.dot_dimension_numbers<[1], [0], [0], [1], [0, 0, 1, 1], [], []>} : vector<16x32xf32>, vector<32x256xf32>, vector<16x256xf32> -> vector<16x256xf32>
    %c0_27 = arith.constant 0 : index
    %c0_28 = arith.constant 0 : index
    %47 = vector.load %arg9[%c0_27, %c0_28] : memref<1x256xf32, #tpu.memory_space<vmem>>, vector<1x256xf32>
    %48 = vector.broadcast %47 : vector<1x256xf32> to vector<16x256xf32>
    %49 = arith.addf %46, %48 : vector<16x256xf32>
    %50 = arith.addf %1, %49 : vector<16x256xf32>
    %cst_29 = arith.constant 0.000000e+00 : f32
    %51 = vector.broadcast %cst_29 : f32 to vector<16x256xf32>
    %52 = arith.maximumf %50, %51 : vector<16x256xf32>
    %53 = vector.shape_cast %52 : vector<16x256xf32> to vector<2x8x256xf32>
    %c0_30 = arith.constant 0 : index
    %c0_31 = arith.constant 0 : index
    %c0_32 = arith.constant 0 : index
    %54 = vector.load %arg10[%c0_30, %c0_31, %c0_32] : memref<2x8x256xf32, #tpu.memory_space<vmem>>, vector<2x8x256xf32>
    tpu.vector_store %arg10[%c0_30, %c0_31, %c0_32], %53 {strides = array<i32>} : memref<2x8x256xf32, #tpu.memory_space<vmem>>, vector<2x8x256xf32>,
    return
  }
  func.func @transform_0(%arg0: i32) -> (i32, i32, i32) {
    %c0_i32 = arith.constant 0 : i32
    %c0_i32_0 = arith.constant 0 : i32
    %c0_i32_1 = arith.constant 0 : i32
    return %arg0, %c0_i32, %c0_i32_0 : i32, i32, i32
  }
  func.func @transform_1(%arg0: i32) -> (i32, i32) {
    %c0_i32 = arith.constant 0 : i32
    %c0_i32_0 = arith.constant 0 : i32
    %c0_i32_1 = arith.constant 0 : i32
    return %c0_i32, %c0_i32_0 : i32, i32
  }
  func.func @transform_2(%arg0: i32) -> (i32, i32) {
    %c0_i32 = arith.constant 0 : i32
    %c0_i32_0 = arith.constant 0 : i32
    %c0_i32_1 = arith.constant 0 : i32
    return %c0_i32, %c0_i32_0 : i32, i32
  }
  func.func @transform_3(%arg0: i32) -> (i32, i32) {
    %c0_i32 = arith.constant 0 : i32
    %c0_i32_0 = arith.constant 0 : i32
    %c0_i32_1 = arith.constant 0 : i32
    return %c0_i32, %c0_i32_0 : i32, i32
  }
  func.func @transform_4(%arg0: i32) -> (i32, i32) {
    %c0_i32 = arith.constant 0 : i32
    %c0_i32_0 = arith.constant 0 : i32
    %c0_i32_1 = arith.constant 0 : i32
    return %c0_i32, %c0_i32_0 : i32, i32
  }
  func.func @transform_5(%arg0: i32) -> (i32, i32) {
    %c0_i32 = arith.constant 0 : i32
    %c0_i32_0 = arith.constant 0 : i32
    %c0_i32_1 = arith.constant 0 : i32
    return %c0_i32, %c0_i32_0 : i32, i32
  }
  func.func @transform_6(%arg0: i32) -> (i32, i32) {
    %c0_i32 = arith.constant 0 : i32
    %c0_i32_0 = arith.constant 0 : i32
    %c0_i32_1 = arith.constant 0 : i32
    return %c0_i32, %c0_i32_0 : i32, i32
  }
  func.func @transform_7(%arg0: i32) -> (i32, i32) {
    %c0_i32 = arith.constant 0 : i32
    %c0_i32_0 = arith.constant 0 : i32
    %c0_i32_1 = arith.constant 0 : i32
    return %c0_i32, %c0_i32_0 : i32, i32
  }
  func.func @transform_8(%arg0: i32) -> (i32, i32) {
    %c0_i32 = arith.constant 0 : i32
    %c0_i32_0 = arith.constant 0 : i32
    %c0_i32_1 = arith.constant 0 : i32
    return %c0_i32, %c0_i32_0 : i32, i32
  }
  func.func @transform_9(%arg0: i32) -> (i32, i32, i32) {
    %c0_i32 = arith.constant 0 : i32
    %c0_i32_0 = arith.constant 0 : i32
    %c0_i32_1 = arith.constant 0 : i32
    return %arg0, %c0_i32, %c0_i32_0 : i32, i32, i32
  }
}

</mosaic_0001>

<llo_original>
// kernel: tpu_custom_call.1
$region0: #{tpu_custom_call.1}
  #allocation0 [shape = 'u32[]', space=smem, size = 0x4, offset = 0x4, fixed_abs, tag = 'smem constant byte address 0x4 - core index']
  #allocation1 [shape = 'u32[144,128]{1,0:T(1,128)}', space=vmem, size = 0x12000, scoped, tag = 'internal scratch']
  %s0 = inlined_call_operand.vmem [shape: f32[4,8,256], index: 0, kind: input, shape index: {}]
  %s1 = inlined_call_operand.vmem [shape: f32[256,32], index: 1, kind: input, shape index: {}]
  %s2 = inlined_call_operand.vmem [shape: f32[1,32], index: 2, kind: input, shape index: {}]
  %s3 = inlined_call_operand.vmem [shape: f32[32,256], index: 3, kind: input, shape index: {}]
  %s4 = inlined_call_operand.vmem [shape: f32[1,256], index: 4, kind: input, shape index: {}]
  %s5 = inlined_call_operand.vmem [shape: f32[256,32], index: 5, kind: input, shape index: {}]
  %s6 = inlined_call_operand.vmem [shape: f32[1,32], index: 6, kind: input, shape index: {}]
  %s7 = inlined_call_operand.vmem [shape: f32[32,256], index: 7, kind: input, shape index: {}]
  %s8 = inlined_call_operand.vmem [shape: f32[1,256], index: 8, kind: input, shape index: {}]
  %s9 = inlined_call_operand.hbm [shape: f32[4,8,256], index: 9, kind: output, shape index: {}]
  %s10 = sld [smem:[#allocation0]]
  $region69: #{tpu_custom_call.1} parent=0
    _
  %s12 = ssub.s32 1, %s10
  %s13 = scalar_select 0, %s12, %s10
  $region1: #{tpu_custom_call.1} parent=0
    #allocation2 [shape = 'u8[32768]{0}', space=vmem, size = 0x8000, scoped, tag = 'output window, operand 0']
    #allocation3 [shape = 's32[2]{0}', space=sflag, size = 0x8, scoped, tag = 'scoped memory for tpu_custom_call.1']
    %14 = vsyncpa [#allocation3], 0
    %s15 = scalar_lea.sflag [#allocation3], 1
    %16 = vsyncpa %s15, 0
    loop: start=0, step=1, limit=4
    $region2: #{tpu_custom_call.1} parent=1 // loop_pre_header
      _
    $region3: #{tpu_custom_call.1} parent=1 // loop_header
      %s18 = sphi 0, %s22
      %p19 = scmp.ge.s32.totalorder %s18, 4
      %s28 = sphi 0, %s30
      %s31 = sphi 0, %s28
      %s32 = sphi 0, %s31
      %s48 = sphi 0, %s32
      %s52 = sphi 0, %s52
      %s54 = sphi 0, %s52
      %s55 = sphi 0, %s54
      %s69 = sphi 0, %s55
      %s73 = sphi 0, %s73
      %s75 = sphi 0, %s73
      %s76 = sphi 0, %s75
      %s90 = sphi 0, %s76
      %s94 = sphi 0, %s94
      %s96 = sphi 0, %s94
      %s97 = sphi 0, %s96
      %s111 = sphi 0, %s97
      %s115 = sphi 0, %s115
      %s117 = sphi 0, %s115
      %s118 = sphi 0, %s117
      %s132 = sphi 0, %s118
      %s136 = sphi 0, %s136
      %s138 = sphi 0, %s136
      %s139 = sphi 0, %s138
      %s153 = sphi 0, %s139
      %s157 = sphi 0, %s157
      %s159 = sphi 0, %s157
      %s160 = sphi 0, %s159
      %s174 = sphi 0, %s160
      %s178 = sphi 0, %s178
      %s180 = sphi 0, %s178
      %s181 = sphi 0, %s180
      %s195 = sphi 0, %s181
      %s199 = sphi 0, %s199
      %s201 = sphi 0, %s199
      %s202 = sphi 0, %s201
      %s216 = sphi 0, %s202
      %s222 = sphi 0, %s224
      %s225 = sphi 0, %s222
      %s226 = sphi 0, %s225
      %s242 = sphi 0, %s226
    $region4: #{tpu_custom_call.1} parent=1 // loop_header_branch
      %21 = sbr.rel (%p19) target = $region8
    $region5: #{tpu_custom_call.1} parent=1 // loop_body
      %s23 = ssub.s32 %s18, 1
      %s24 = ssub.s32 %s18, 2
      %s25 = sadd.s32 %s18, 1
      %s26 = ssub.s32 %s18, %s25
      %p27 = scmp.eq.s32.totalorder %s26, 0
      %s29 = sadd.s32 %s28, 1
      %s30 = scalar_select %p27, %s28, %s29
      %p33 = pneg %p27
      %p34 = scmp.eq.s32.totalorder %s18, 1
      %p35 = por %p33, %p34
      %p36 = scmp.ne.s32.totalorder %s28, %s31
      %p37 = scmp.eq.s32.totalorder %s18, 0
      %p38 = por %p36, %p37
      %p39 = scmp.ne.s32.totalorder %s28, %s31
      %p40 = scmp.eq.s32.totalorder %s23, 1
      %p41 = por %p39, %p40
      %p42 = scmp.ne.s32.totalorder %s31, %s32
      %p43 = scmp.eq.s32.totalorder %s23, 0
      %p44 = por %p42, %p43
      %p45 = scmp.ne.s32.totalorder %s31, %s32
      %p46 = scmp.eq.s32.totalorder %s24, 1
      %p47 = por %p45, %p46
      %p49 = scmp.ne.s32.totalorder %s32, %s48
      %p50 = scmp.eq.s32.totalorder %s24, 0
      %p51 = por %p49, %p50
      %s53 = sadd.s32 %s52, 1
      %p56 = scmp.eq.s32.totalorder %s18, 1
      %p57 = scmp.ne.s32.totalorder %s52, %s54
      %p58 = scmp.eq.s32.totalorder %s18, 0
      %p59 = por %p57, %p58
      %p60 = scmp.ne.s32.totalorder %s52, %s54
      %p61 = scmp.eq.s32.totalorder %s23, 1
      %p62 = por %p60, %p61
      %p63 = scmp.ne.s32.totalorder %s54, %s55
      %p64 = scmp.eq.s32.totalorder %s23, 0
      %p65 = por %p63, %p64
      %p66 = scmp.ne.s32.totalorder %s54, %s55
      %p67 = scmp.eq.s32.totalorder %s24, 1
      %p68 = por %p66, %p67
      %p70 = scmp.ne.s32.totalorder %s55, %s69
      %p71 = scmp.eq.s32.totalorder %s24, 0
      %p72 = por %p70, %p71
      %s74 = sadd.s32 %s73, 1
      %p77 = scmp.eq.s32.totalorder %s18, 1
      %p78 = scmp.ne.s32.totalorder %s73, %s75
      %p79 = scmp.eq.s32.totalorder %s18, 0
      %p80 = por %p78, %p79
      %p81 = scmp.ne.s32.totalorder %s73, %s75
      %p82 = scmp.eq.s32.totalorder %s23, 1
      %p83 = por %p81, %p82
      %p84 = scmp.ne.s32.totalorder %s75, %s76
      %p85 = scmp.eq.s32.totalorder %s23, 0
      %p86 = por %p84, %p85
      %p87 = scmp.ne.s32.totalorder %s75, %s76
      %p88 = scmp.eq.s32.totalorder %s24, 1
      %p89 = por %p87, %p88
      %p91 = scmp.ne.s32.totalorder %s76, %s90
      %p92 = scmp.eq.s32.totalorder %s24, 0
      %p93 = por %p91, %p92
      %s95 = sadd.s32 %s94, 1
      %p98 = scmp.eq.s32.totalorder %s18, 1
      %p99 = scmp.ne.s32.totalorder %s94, %s96
      %p100 = scmp.eq.s32.totalorder %s18, 0
      %p101 = por %p99, %p100
      %p102 = scmp.ne.s32.totalorder %s94, %s96
      %p103 = scmp.eq.s32.totalorder %s23, 1
      %p104 = por %p102, %p103
      %p105 = scmp.ne.s32.totalorder %s96, %s97
      %p106 = scmp.eq.s32.totalorder %s23, 0
      %p107 = por %p105, %p106
      %p108 = scmp.ne.s32.totalorder %s96, %s97
      %p109 = scmp.eq.s32.totalorder %s24, 1
      %p110 = por %p108, %p109
      %p112 = scmp.ne.s32.totalorder %s97, %s111
      %p113 = scmp.eq.s32.totalorder %s24, 0
      %p114 = por %p112, %p113
      %s116 = sadd.s32 %s115, 1
      %p119 = scmp.eq.s32.totalorder %s18, 1
      %p120 = scmp.ne.s32.totalorder %s115, %s117
      %p121 = scmp.eq.s32.totalorder %s18, 0
      %p122 = por %p120, %p121
      %p123 = scmp.ne.s32.totalorder %s115, %s117
      %p124 = scmp.eq.s32.totalorder %s23, 1
      %p125 = por %p123, %p124
      %p126 = scmp.ne.s32.totalorder %s117, %s118
      %p127 = scmp.eq.s32.totalorder %s23, 0
      %p128 = por %p126, %p127
      %p129 = scmp.ne.s32.totalorder %s117, %s118
      %p130 = scmp.eq.s32.totalorder %s24, 1
      %p131 = por %p129, %p130
      %p133 = scmp.ne.s32.totalorder %s118, %s132
      %p134 = scmp.eq.s32.totalorder %s24, 0
      %p135 = por %p133, %p134
      %s137 = sadd.s32 %s136, 1
      %p140 = scmp.eq.s32.totalorder %s18, 1
      %p141 = scmp.ne.s32.totalorder %s136, %s138
      %p142 = scmp.eq.s32.totalorder %s18, 0
      %p143 = por %p141, %p142
      %p144 = scmp.ne.s32.totalorder %s136, %s138
      %p145 = scmp.eq.s32.totalorder %s23, 1
      %p146 = por %p144, %p145
      %p147 = scmp.ne.s32.totalorder %s138, %s139
      %p148 = scmp.eq.s32.totalorder %s23, 0
      %p149 = por %p147, %p148
      %p150 = scmp.ne.s32.totalorder %s138, %s139
      %p151 = scmp.eq.s32.totalorder %s24, 1
      %p152 = por %p150, %p151
      %p154 = scmp.ne.s32.totalorder %s139, %s153
      %p155 = scmp.eq.s32.totalorder %s24, 0
      %p156 = por %p154, %p155
      %s158 = sadd.s32 %s157, 1
      %p161 = scmp.eq.s32.totalorder %s18, 1
      %p162 = scmp.ne.s32.totalorder %s157, %s159
      %p163 = scmp.eq.s32.totalorder %s18, 0
      %p164 = por %p162, %p163
      %p165 = scmp.ne.s32.totalorder %s157, %s159
      %p166 = scmp.eq.s32.totalorder %s23, 1
      %p167 = por %p165, %p166
      %p168 = scmp.ne.s32.totalorder %s159, %s160
      %p169 = scmp.eq.s32.totalorder %s23, 0
      %p170 = por %p168, %p169
      %p171 = scmp.ne.s32.totalorder %s159, %s160
      %p172 = scmp.eq.s32.totalorder %s24, 1
      %p173 = por %p171, %p172
      %p175 = scmp.ne.s32.totalorder %s160, %s174
      %p176 = scmp.eq.s32.totalorder %s24, 0
      %p177 = por %p175, %p176
      %s179 = sadd.s32 %s178, 1
      %p182 = scmp.eq.s32.totalorder %s18, 1
      %p183 = scmp.ne.s32.totalorder %s178, %s180
      %p184 = scmp.eq.s32.totalorder %s18, 0
      %p185 = por %p183, %p184
      %p186 = scmp.ne.s32.totalorder %s178, %s180
      %p187 = scmp.eq.s32.totalorder %s23, 1
      %p188 = por %p186, %p187
      %p189 = scmp.ne.s32.totalorder %s180, %s181
      %p190 = scmp.eq.s32.totalorder %s23, 0
      %p191 = por %p189, %p190
      %p192 = scmp.ne.s32.totalorder %s180, %s181
      %p193 = scmp.eq.s32.totalorder %s24, 1
      %p194 = por %p192, %p193
      %p196 = scmp.ne.s32.totalorder %s181, %s195
      %p197 = scmp.eq.s32.totalorder %s24, 0
      %p198 = por %p196, %p197
      %s200 = sadd.s32 %s199, 1
      %p203 = scmp.eq.s32.totalorder %s18, 1
      %p204 = scmp.ne.s32.totalorder %s199, %s201
      %p205 = scmp.eq.s32.totalorder %s18, 0
      %p206 = por %p204, %p205
      %p207 = scmp.ne.s32.totalorder %s199, %s201
      %p208 = scmp.eq.s32.totalorder %s23, 1
      %p209 = por %p207, %p208
      %p210 = scmp.ne.s32.totalorder %s201, %s202
      %p211 = scmp.eq.s32.totalorder %s23, 0
      %p212 = por %p210, %p211
      %p213 = scmp.ne.s32.totalorder %s201, %s202
      %p214 = scmp.eq.s32.totalorder %s24, 1
      %p215 = por %p213, %p214
      %p217 = scmp.ne.s32.totalorder %s202, %s216
      %p218 = scmp.eq.s32.totalorder %s24, 0
      %p219 = por %p217, %p218
      %s220 = ssub.s32 %s18, %s25
      %p221 = scmp.eq.s32.totalorder %s220, 0
      %s223 = sadd.s32 %s222, 1
      %s224 = scalar_select %p221, %s222, %s223
      %p227 = pneg %p221
      %p228 = scmp.eq.s32.totalorder %s18, 1
      %p229 = por %p227, %p228
      %p230 = scmp.ne.s32.totalorder %s222, %s225
      %p231 = scmp.eq.s32.totalorder %s18, 0
      %p232 = por %p230, %p231
      %p233 = scmp.ne.s32.totalorder %s222, %s225
      %p234 = scmp.eq.s32.totalorder %s23, 1
      %p235 = por %p233, %p234
      %p236 = scmp.ne.s32.totalorder %s225, %s226
      %p237 = scmp.eq.s32.totalorder %s23, 0
      %p238 = por %p236, %p237
      %p239 = scmp.ne.s32.totalorder %s225, %s226
      %p240 = scmp.eq.s32.totalorder %s24, 1
      %p241 = por %p239, %p240
      %p243 = scmp.ne.s32.totalorder %s226, %s242
      %p244 = scmp.eq.s32.totalorder %s24, 0
      %p245 = por %p243, %p244
      %p246 = scmp.le.s32.totalorder 1, %s18
      %p247 = scmp.lt.s32.totalorder %s18, 3
      %p248 = pnand %p246, %p247
      %p249 = pneg %p248
      // Predicated region
      $region9: #{tpu_custom_call.1} parent=5 // pred_check
        _
      $region10: #{tpu_custom_call.1} parent=5 // pred_check_branch
        %251 = sbr.rel (%p248) target = $region12
      $region11: #{tpu_custom_call.1} parent=5 // pred_region
        %s252 = ssub.s32 %s18, 1
        // Predicated region
        $region13: #{tpu_custom_call.1} parent=11 // pred_check
          %p253 = pneg %p65
        $region14: #{tpu_custom_call.1} parent=11 // pred_check_branch
          %255 = sbr.rel (%p253) target = $region16
        $region15: #{tpu_custom_call.1} parent=11 // pred_region
          _
        $region16: #{tpu_custom_call.1} parent=11 // pred_fallthru
          _
        // Predicated region
        $region17: #{tpu_custom_call.1} parent=11 // pred_check
          %p256 = pneg %p86
        $region18: #{tpu_custom_call.1} parent=11 // pred_check_branch
          %258 = sbr.rel (%p256) target = $region20
        $region19: #{tpu_custom_call.1} parent=11 // pred_region
          _
        $region20: #{tpu_custom_call.1} parent=11 // pred_fallthru
          _
        // Predicated region
        $region21: #{tpu_custom_call.1} parent=11 // pred_check
          %p259 = pneg %p107
        $region22: #{tpu_custom_call.1} parent=11 // pred_check_branch
          %261 = sbr.rel (%p259) target = $region24
        $region23: #{tpu_custom_call.1} parent=11 // pred_region
          _
        $region24: #{tpu_custom_call.1} parent=11 // pred_fallthru
          _
        // Predicated region
        $region25: #{tpu_custom_call.1} parent=11 // pred_check
          %p262 = pneg %p128
        $region26: #{tpu_custom_call.1} parent=11 // pred_check_branch
          %264 = sbr.rel (%p262) target = $region28
        $region27: #{tpu_custom_call.1} parent=11 // pred_region
          _
        $region28: #{tpu_custom_call.1} parent=11 // pred_fallthru
          _
        // Predicated region
        $region29: #{tpu_custom_call.1} parent=11 // pred_check
          %p265 = pneg %p149
        $region30: #{tpu_custom_call.1} parent=11 // pred_check_branch
          %267 = sbr.rel (%p265) target = $region32
        $region31: #{tpu_custom_call.1} parent=11 // pred_region
          _
        $region32: #{tpu_custom_call.1} parent=11 // pred_fallthru
          _
        // Predicated region
        $region33: #{tpu_custom_call.1} parent=11 // pred_check
          %p268 = pneg %p170
        $region34: #{tpu_custom_call.1} parent=11 // pred_check_branch
          %270 = sbr.rel (%p268) target = $region36
        $region35: #{tpu_custom_call.1} parent=11 // pred_region
          _
        $region36: #{tpu_custom_call.1} parent=11 // pred_fallthru
          _
        // Predicated region
        $region37: #{tpu_custom_call.1} parent=11 // pred_check
          %p271 = pneg %p191
        $region38: #{tpu_custom_call.1} parent=11 // pred_check_branch
          %273 = sbr.rel (%p271) target = $region40
        $region39: #{tpu_custom_call.1} parent=11 // pred_region
          _
        $region40: #{tpu_custom_call.1} parent=11 // pred_fallthru
          _
        // Predicated region
        $region41: #{tpu_custom_call.1} parent=11 // pred_check
          %p274 = pneg %p212
        $region42: #{tpu_custom_call.1} parent=11 // pred_check_branch
          %276 = sbr.rel (%p274) target = $region44
        $region43: #{tpu_custom_call.1} parent=11 // pred_region
          _
        $region44: #{tpu_custom_call.1} parent=11 // pred_fallthru
          _
      $region12: #{tpu_custom_call.1} parent=5 // pred_fallthru
        _
      %p277 = scmp.lt.s32.totalorder %s18, 2
      // Predicated region
      $region45: #{tpu_custom_call.1} parent=5 // pred_check
        %p278 = pneg %p277
      $region46: #{tpu_custom_call.1} parent=5 // pred_check_branch
        %280 = sbr.rel (%p278) target = $region48
      $region47: #{tpu_custom_call.1} parent=5 // pred_region
        // Predicated region
        $region49: #{tpu_custom_call.1} parent=47 // pred_check
          %p281 = pneg %p38
        $region50: #{tpu_custom_call.1} parent=47 // pred_check_branch
          %283 = sbr.rel (%p281) target = $region52
        $region51: #{tpu_custom_call.1} parent=47 // pred_region
          %s284 = smul.u32 2, %s18
          %p285 = scmp.lt.s32.totalorder %s284, 3
          %s286 = scalar_select %p285, %s284, 3
          %s287 = smul.addr %s286, 2
          %s288 = smul.addr %s287, 8
          %s289 = scalar_lea.vmem %s0, %s288
          %s290 = smul.u32 2, %s18
        $region52: #{tpu_custom_call.1} parent=47 // pred_fallthru
          _
      $region48: #{tpu_custom_call.1} parent=5 // pred_fallthru
        _
      %p291 = scmp.le.s32.totalorder 1, %s18
      %p292 = scmp.lt.s32.totalorder %s18, 3
      %p293 = pnand %p291, %p292
      %p294 = pneg %p293
      // Predicated region
      $region53: #{tpu_custom_call.1} parent=5 // pred_check
        _
      $region54: #{tpu_custom_call.1} parent=5 // pred_check_branch
        %296 = sbr.rel (%p293) target = $region56
      $region55: #{tpu_custom_call.1} parent=5 // pred_region
        %s297 = ssub.s32 %s18, 1
        %s298 = smul.u32 2, %s23
        %p299 = scmp.lt.s32.totalorder %s298, 3
        %s300 = scalar_select %p299, %s298, 3
        %s301 = smul.addr %s300, 2
        %s302 = smul.addr %s301, 8
        %s303 = scalar_lea.vmem %s0, %s302
        %p304 = pneg %p44
        %p305 = pneg %p41
        %p306 = pneg %p65
        %p307 = pneg %p62
        %p308 = pneg %p86
        %p309 = pneg %p83
        %p310 = pneg %p107
        %p311 = pneg %p104
        %p312 = pneg %p128
        %p313 = pneg %p125
        %p314 = pneg %p149
        %p315 = pneg %p146
        %p316 = pneg %p170
        %p317 = pneg %p167
        %p318 = pneg %p191
        %p319 = pneg %p188
        %p320 = pneg %p212
        %p321 = pneg %p209
        %p322 = pneg %p238
        %p323 = pneg %p235
        %s324 = sand.u32 %s225, 1
        %s325 = scalar_lea.sflag [#allocation3], %s324
        %s326 = sand.u32 %s225, 1
        %s327 = smul.addr %s326, 32
        %s328 = scalar_lea.vmem [#allocation2], %s327
        %s329 = smul.u32 2, %s23
        %p330 = scmp.lt.s32.totalorder %s329, 3
        %s331 = scalar_select %p330, %s329, 3
        %s332 = smul.addr %s331, 2
        %s333 = smul.addr %s332, 8
        %s334 = scalar_lea.vmem %s0, %s333
        %s335 = smul.u32 2, %s23
        %s336 = smul.u32 2, %s23
        %v337 = vld [vmem:[%s334] sm:$0xff]
        %v338 = vld [vmem:[%s334 + $0x8] sm:$0xff]
        %v339 = vld [vmem:[%s334 + $0x10] sm:$0xff]
        %v340 = vld [vmem:[%s334 + $0x18] sm:$0xff]
        %v341 = vld [vmem:[%s1] sm:$0xff]
        %v342 = vld [vmem:[%s1 + $0x8] sm:$0xff]
        %v343 = vld [vmem:[%s1 + $0x10] sm:$0xff]
        %v344 = vld [vmem:[%s1 + $0x18] sm:$0xff]
        %v345 = vld [vmem:[%s1 + $0x20] sm:$0xff]
        %v346 = vld [vmem:[%s1 + $0x28] sm:$0xff]
        %v347 = vld [vmem:[%s1 + $0x30] sm:$0xff]
        %v348 = vld [vmem:[%s1 + $0x38] sm:$0xff]
        %v349 = vld [vmem:[%s1 + $0x40] sm:$0xff]
        %v350 = vld [vmem:[%s1 + $0x48] sm:$0xff]
        %v351 = vld [vmem:[%s1 + $0x50] sm:$0xff]
        %v352 = vld [vmem:[%s1 + $0x58] sm:$0xff]
        %v353 = vld [vmem:[%s1 + $0x60] sm:$0xff]
        %v354 = vld [vmem:[%s1 + $0x68] sm:$0xff]
        %v355 = vld [vmem:[%s1 + $0x70] sm:$0xff]
        %v356 = vld [vmem:[%s1 + $0x78] sm:$0xff]
        %v357 = vld [vmem:[%s1 + $0x80] sm:$0xff]
        %v358 = vld [vmem:[%s1 + $0x88] sm:$0xff]
        %v359 = vld [vmem:[%s1 + $0x90] sm:$0xff]
        %v360 = vld [vmem:[%s1 + $0x98] sm:$0xff]
        %v361 = vld [vmem:[%s1 + $0xa0] sm:$0xff]
        %v362 = vld [vmem:[%s1 + $0xa8] sm:$0xff]
        %v363 = vld [vmem:[%s1 + $0xb0] sm:$0xff]
        %v364 = vld [vmem:[%s1 + $0xb8] sm:$0xff]
        %v365 = vld [vmem:[%s1 + $0xc0] sm:$0xff]
        %v366 = vld [vmem:[%s1 + $0xc8] sm:$0xff]
        %v367 = vld [vmem:[%s1 + $0xd0] sm:$0xff]
        %v368 = vld [vmem:[%s1 + $0xd8] sm:$0xff]
        %v369 = vld [vmem:[%s1 + $0xe0] sm:$0xff]
        %v370 = vld [vmem:[%s1 + $0xe8] sm:$0xff]
        %v371 = vld [vmem:[%s1 + $0xf0] sm:$0xff]
        %v372 = vld [vmem:[%s1 + $0xf8] sm:$0xff]
        %v373 = vld [vmem:[%s2] sm:$0x1]
        %v375 = vlaneseq
        %v376 = vshrl.u32 %v375, 7
        %v377 = vsub.s32 0, %v376
        %v378 = vrot.slane %v373, %v377
        %380 = vmatprep.subr.mxu0 0.0
        %381 = vmatpush1.msra.mxu0 %v341
        %382 = vmatprep.subr.mxu0 0.0
        %383 = vmatpush1.msra.mxu0 %v342
        %384 = vmatprep.subr.mxu0 0.0
        %385 = vmatpush1.msra.mxu0 %v343
        %386 = vmatprep.subr.mxu0 0.0
        %387 = vmatpush1.msra.mxu0 %v344
        %388 = vmatprep.subr.mxu0 0.0
        %389 = vmatpush1.msra.mxu0 %v345
        %390 = vmatprep.subr.mxu0 0.0
        %391 = vmatpush1.msra.mxu0 %v346
        %392 = vmatprep.subr.mxu0 0.0
        %393 = vmatpush1.msra.mxu0 %v347
        %394 = vmatprep.subr.mxu0 0.0
        %395 = vmatpush1.msra.mxu0 %v348
        %396 = vmatprep.subr.mxu0 0.0
        %397 = vmatpush1.msra.mxu0 %v349
        %398 = vmatprep.subr.mxu0 0.0
        %399 = vmatpush1.msra.mxu0 %v350
        %400 = vmatprep.subr.mxu0 0.0
        %401 = vmatpush1.msra.mxu0 %v351
        %402 = vmatprep.subr.mxu0 0.0
        %403 = vmatpush1.msra.mxu0 %v352
        %404 = vmatprep.subr.mxu0 0.0
        %405 = vmatpush1.msra.mxu0 %v353
        %406 = vmatprep.subr.mxu0 0.0
        %407 = vmatpush1.msra.mxu0 %v354
        %408 = vmatprep.subr.mxu0 0.0
        %409 = vmatpush1.msra.mxu0 %v355
        %410 = vmatprep.subr.mxu0 0.0
        %411 = vmatpush1.msra.mxu0 %v356
        %412 = vmatprep.subr.mxu0 0.0
        %413 = vmatpush1.msra.mxu0 %v357
        %414 = vmatprep.subr.mxu0 0.0
        %415 = vmatpush1.msra.mxu0 %v358
        %416 = vmatprep.subr.mxu0 0.0
        %417 = vmatpush1.msra.mxu0 %v359
        %418 = vmatprep.subr.mxu0 0.0
        %419 = vmatpush1.msra.mxu0 %v360
        %420 = vmatprep.subr.mxu0 0.0
        %421 = vmatpush1.msra.mxu0 %v361
        %422 = vmatprep.subr.mxu0 0.0
        %423 = vmatpush1.msra.mxu0 %v362
        %424 = vmatprep.subr.mxu0 0.0
        %425 = vmatpush1.msra.mxu0 %v363
        %426 = vmatprep.subr.mxu0 0.0
        %427 = vmatpush1.msra.mxu0 %v364
        %428 = vmatprep.subr.mxu0 0.0
        %429 = vmatpush1.msra.mxu0 %v365
        %430 = vmatprep.subr.mxu0 0.0
        %431 = vmatpush1.msra.mxu0 %v366
        %432 = vmatprep.subr.mxu0 0.0
        %433 = vmatpush1.msra.mxu0 %v367
        %434 = vmatprep.subr.mxu0 0.0
        %435 = vmatpush1.msra.mxu0 %v368
        %436 = vmatprep.subr.mxu0 0.0
        %437 = vmatpush1.msra.mxu0 %v369
        %438 = vmatprep.subr.mxu0 0.0
        %439 = vmatpush1.msra.mxu0 %v370
        %440 = vmatprep.subr.mxu0 0.0
        %441 = vmatpush1.msra.mxu0 %v371
        %442 = vmatprep.subr.mxu0 0.0
        %443 = vmatpush1.msra.mxu0 %v372
        %444 = vmatprep.mubr.f32.mxu0 %v338
        %445 = vmatmul.mubr.f32.gmra.mrb[0].mxu0 %v337
        %v446 = vpop.f32.mrb[0].mxu0
        %v447 = vadd.f32 %v378, %v446
        %v448 = vpop.f32.mrb[0].mxu0
        %449 = vmatprep.mubr.f32.mxu0 %v340
        %450 = vmatmul.mubr.f32.gmra.mrb[0].mxu0 %v339
        %v451 = vpop.f32.mrb[0].mxu0
        %v452 = vadd.f32 %v378, %v451
        %v453 = vpop.f32.mrb[0].mxu0
        %454 = vdwg.mxu0
        %v455 = vmax.f32 %v447, 0.0
        %v456 = vmax.f32 %v452, 0.0
        %v457 = vld [vmem:[%s3] sm:$0xff]
        %v458 = vld [vmem:[%s3 + $0x8] sm:$0xff]
        %v459 = vld [vmem:[%s3 + $0x10] sm:$0xff]
        %v460 = vld [vmem:[%s3 + $0x18] sm:$0xff]
        %v461 = vld [vmem:[%s3 + $0x20] sm:$0xff]
        %v462 = vld [vmem:[%s3 + $0x28] sm:$0xff]
        %v463 = vld [vmem:[%s3 + $0x30] sm:$0xff]
        %v464 = vld [vmem:[%s3 + $0x38] sm:$0xff]
        %v465 = vld [vmem:[%s4] sm:$0x3]
        %v467 = vlaneseq
        %v468 = vshrl.u32 %v467, 7
        %v469 = vsub.s32 0, %v468
        %v470 = vrot.slane %v465, %v469
        %v471 = vlaneseq
        %v472 = vshrl.u32 %v471, 7
        %v473 = vsub.s32 1, %v472
        %v474 = vrot.slane %v465, %v473
        %vm477 = vcmask 261120
        %v479 = vsel %vm477, %v455, 0
        %v482 = vsel %vm477, %v456, 0
        %484 = vmatprep.subr.mxu0 %v458
        %485 = vmatpush1.msra.mxu0 %v457
        %486 = vmatprep.subr.mxu0 %v460
        %487 = vmatpush1.msra.mxu0 %v459
        %488 = vmatprep.subr.mxu0 %v462
        %489 = vmatpush1.msra.mxu0 %v461
        %490 = vmatprep.subr.mxu0 %v464
        %491 = vmatpush1.msra.mxu0 %v463
        %492 = vmatprep.subr.mxu0 0.0
        %493 = vmatpush1.msra.mxu0 0.0
        %494 = vmatprep.subr.mxu0 0.0
        %495 = vmatpush1.msra.mxu0 0.0
        %496 = vmatprep.subr.mxu0 0.0
        %497 = vmatpush1.msra.mxu0 0.0
        %498 = vmatprep.subr.mxu0 0.0
        %499 = vmatpush1.msra.mxu0 0.0
        %500 = vmatprep.subr.mxu0 0.0
        %501 = vmatpush1.msra.mxu0 0.0
        %502 = vmatprep.subr.mxu0 0.0
        %503 = vmatpush1.msra.mxu0 0.0
        %504 = vmatprep.subr.mxu0 0.0
        %505 = vmatpush1.msra.mxu0 0.0
        %506 = vmatprep.subr.mxu0 0.0
        %507 = vmatpush1.msra.mxu0 0.0
        %508 = vmatprep.subr.mxu0 0.0
        %509 = vmatpush1.msra.mxu0 0.0
        %510 = vmatprep.subr.mxu0 0.0
        %511 = vmatpush1.msra.mxu0 0.0
        %512 = vmatprep.subr.mxu0 0.0
        %513 = vmatpush1.msra.mxu0 0.0
        %514 = vmatprep.subr.mxu0 0.0
        %515 = vmatpush1.msra.mxu0 0.0
        %516 = vmatprep.subr.mxu0 0.0
        %517 = vmatpush1.msra.mxu0 0.0
        %518 = vmatprep.subr.mxu0 0.0
        %519 = vmatpush1.msra.mxu0 0.0
        %520 = vmatprep.subr.mxu0 0.0
        %521 = vmatpush1.msra.mxu0 0.0
        %522 = vmatprep.subr.mxu0 0.0
        %523 = vmatpush1.msra.mxu0 0.0
        %524 = vmatprep.subr.mxu0 0.0
        %525 = vmatpush1.msra.mxu0 0.0
        %526 = vmatprep.subr.mxu0 0.0
        %527 = vmatpush1.msra.mxu0 0.0
        %528 = vmatprep.subr.mxu0 0.0
        %529 = vmatpush1.msra.mxu0 0.0
        %530 = vmatprep.subr.mxu0 0.0
        %531 = vmatpush1.msra.mxu0 0.0
        %532 = vmatprep.subr.mxu0 0.0
        %533 = vmatpush1.msra.mxu0 0.0
        %534 = vmatprep.subr.mxu0 0.0
        %535 = vmatpush1.msra.mxu0 0.0
        %536 = vmatprep.subr.mxu0 0.0
        %537 = vmatpush1.msra.mxu0 0.0
        %538 = vmatprep.subr.mxu0 0.0
        %539 = vmatpush1.msra.mxu0 0.0
        %540 = vmatprep.subr.mxu0 0.0
        %541 = vmatpush1.msra.mxu0 0.0
        %542 = vmatprep.subr.mxu0 0.0
        %543 = vmatpush1.msra.mxu0 0.0
        %544 = vmatprep.subr.mxu0 0.0
        %545 = vmatpush1.msra.mxu0 0.0
        %546 = vmatprep.subr.mxu0 0.0
        %547 = vmatpush1.msra.mxu0 0.0
        %548 = vmatprep.mubr.f32.mxu0 0.0
        %549 = vmatmul.mubr.f32.gmra.mrb[0].mxu0 %v479
        %v550 = vpop.f32.mrb[0].mxu0
        %v551 = vadd.f32 %v470, %v550
        %v552 = vpop.f32.mrb[0].mxu0
        %v553 = vadd.f32 %v474, %v552
        %554 = vmatprep.mubr.f32.mxu0 0.0
        %555 = vmatmul.mubr.f32.gmra.mrb[0].mxu0 %v482
        %v556 = vpop.f32.mrb[0].mxu0
        %v557 = vadd.f32 %v470, %v556
        %v558 = vpop.f32.mrb[0].mxu0
        %v559 = vadd.f32 %v474, %v558
        %560 = vdwg.mxu0
        %v561 = vadd.f32 %v551, %v553
        %562 = vadd.xlane.f32.xlu0 %v561
        %v563 = vpop.xlane.xlu0 %562
        %v564 = vadd.f32 %v557, %v559
        %565 = vadd.xlane.f32.xlu0 %v564
        %v566 = vpop.xlane.xlu0 %565
        %v567 = vrcp.pop 256.0
        %v568 = vmul.f32 %v563, %v567
        %v569 = vmul.f32 %v566, %v567
        %v572 = vlaneseq
        %v573 = vand.u32 %v572, 127
        %v574 = vlaneseq
        %v575 = vshrl.u32 %v574, 7
        %v576 = vsub.s32 %v573, %v575
        %v577 = vrot.slane %v568, %v576
        %v578 = vlaneseq
        %v579 = vshrl.u32 %v578, 7
        %v580 = vsub.s32 %v573, %v579
        %v581 = vrot.slane %v569, %v580
        %vm582 = vcmask 1042434
        %v583 = vsel %vm582, %v577, %v577
        %vm584 = vcmask 1043459
        %v585 = vsel %vm584, %v577, %v583
        %vm586 = vcmask 1044484
        %v587 = vsel %vm586, %v577, %v585
        %vm588 = vcmask 1045509
        %v589 = vsel %vm588, %v577, %v587
        %vm590 = vcmask 1046534
        %v591 = vsel %vm590, %v577, %v589
        %vm592 = vcmask 1047559
        %v593 = vsel %vm592, %v577, %v591
        %v594 = vsel %vm582, %v581, %v581
        %v595 = vsel %vm584, %v581, %v594
        %v596 = vsel %vm586, %v581, %v595
        %v597 = vsel %vm588, %v581, %v596
        %v598 = vsel %vm590, %v581, %v597
        %v599 = vsel %vm592, %v581, %v598
        %v602 = vsub.f32 %v568, %v593
        %v603 = vsub.f32 %v569, %v599
        %v604 = vmul.f32 %v602, %v602
        %v605 = vmul.f32 %v603, %v603
        %v606 = vsub.f32 0.0, %v604
        %v607 = vsub.f32 0.0, %v605
        %vm608 = vcmask 64512
        %v609 = vsel %vm608, %v606, -inf
        %610 = vmax.xlane.f32.xlu0 %v609
        %v611 = vpop.xlane.xlu0 %610
        %v612 = vsel %vm608, %v607, -inf
        %613 = vmax.xlane.f32.xlu0 %v612
        %v614 = vpop.xlane.xlu0 %613
        %v615 = vsub.f32 %v606, %v611
        %v616 = vsub.f32 %v607, %v614
        %v617 = vmul.f32 %v615, 1.442695
        %v618 = vpow.pop %v617
        %v619 = vmul.f32 %v616, 1.442695
        %v620 = vpow.pop %v619
        %v621 = vsel %vm608, %v618, 0.0
        %622 = vadd.xlane.f32.xlu0 %v621
        %v623 = vpop.xlane.xlu0 %622
        %v624 = vsel %vm608, %v620, 0.0
        %625 = vadd.xlane.f32.xlu0 %v624
        %v626 = vpop.xlane.xlu0 %625
        %v627 = vrcp.pop %v623
        %v628 = vrcp.pop %v626
        %v629 = vmul.f32 %v618, %v627
        %v630 = vmul.f32 %v620, %v628
        %v632 = vsel %vm608, %v629, 0
        %634 = vmatprep.subr.mxu0 %v553
        %635 = vmatpush1.msra.mxu0 %v551
        %636 = vmatprep.subr.mxu0 0.0
        %637 = vmatpush1.msra.mxu0 0.0
        %638 = vmatprep.subr.mxu0 0.0
        %639 = vmatpush1.msra.mxu0 0.0
        %640 = vmatprep.subr.mxu0 0.0
        %641 = vmatpush1.msra.mxu0 0.0
        %642 = vmatprep.subr.mxu0 0.0
        %643 = vmatpush1.msra.mxu0 0.0
        %644 = vmatprep.subr.mxu0 0.0
        %645 = vmatpush1.msra.mxu0 0.0
        %646 = vmatprep.subr.mxu0 0.0
        %647 = vmatpush1.msra.mxu0 0.0
        %648 = vmatprep.subr.mxu0 0.0
        %649 = vmatpush1.msra.mxu0 0.0
        %650 = vmatprep.subr.mxu0 0.0
        %651 = vmatpush1.msra.mxu0 0.0
        %652 = vmatprep.subr.mxu0 0.0
        %653 = vmatpush1.msra.mxu0 0.0
        %654 = vmatprep.subr.mxu0 0.0
        %655 = vmatpush1.msra.mxu0 0.0
        %656 = vmatprep.subr.mxu0 0.0
        %657 = vmatpush1.msra.mxu0 0.0
        %658 = vmatprep.subr.mxu0 0.0
        %659 = vmatpush1.msra.mxu0 0.0
        %660 = vmatprep.subr.mxu0 0.0
        %661 = vmatpush1.msra.mxu0 0.0
        %662 = vmatprep.subr.mxu0 0.0
        %663 = vmatpush1.msra.mxu0 0.0
        %664 = vmatprep.subr.mxu0 0.0
        %665 = vmatpush1.msra.mxu0 0.0
        %666 = vmatprep.subr.mxu0 0.0
        %667 = vmatpush1.msra.mxu0 0.0
        %668 = vmatprep.subr.mxu0 0.0
        %669 = vmatpush1.msra.mxu0 0.0
        %670 = vmatprep.subr.mxu0 0.0
        %671 = vmatpush1.msra.mxu0 0.0
        %672 = vmatprep.subr.mxu0 0.0
        %673 = vmatpush1.msra.mxu0 0.0
        %674 = vmatprep.subr.mxu0 0.0
        %675 = vmatpush1.msra.mxu0 0.0
        %676 = vmatprep.subr.mxu0 0.0
        %677 = vmatpush1.msra.mxu0 0.0
        %678 = vmatprep.subr.mxu0 0.0
        %679 = vmatpush1.msra.mxu0 0.0
        %680 = vmatprep.subr.mxu0 0.0
        %681 = vmatpush1.msra.mxu0 0.0
        %682 = vmatprep.subr.mxu0 0.0
        %683 = vmatpush1.msra.mxu0 0.0
        %684 = vmatprep.subr.mxu0 0.0
        %685 = vmatpush1.msra.mxu0 0.0
        %686 = vmatprep.subr.mxu0 0.0
        %687 = vmatpush1.msra.mxu0 0.0
        %688 = vmatprep.subr.mxu0 0.0
        %689 = vmatpush1.msra.mxu0 0.0
        %690 = vmatprep.subr.mxu0 0.0
        %691 = vmatpush1.msra.mxu0 0.0
        %692 = vmatprep.subr.mxu0 0.0
        %693 = vmatpush1.msra.mxu0 0.0
        %694 = vmatprep.subr.mxu0 0.0
        %695 = vmatpush1.msra.mxu0 0.0
        %696 = vmatprep.subr.mxu0 0.0
        %697 = vmatpush1.msra.mxu0 0.0
        %698 = vmatprep.mubr.f32.mxu0 0.0
        %699 = vmatmul.mubr.f32.gmra.mrb[0].mxu0 %v632
        %v700 = vpop.f32.mrb[0].mxu0
        %v701 = vadd.f32 0.0, %v700
        %v702 = vpop.f32.mrb[0].mxu0
        %v703 = vadd.f32 0.0, %v702
        %704 = vdwg.mxu0
        %v706 = vsel %vm608, %v630, 0
        %708 = vmatprep.subr.mxu0 %v559
        %709 = vmatpush1.msra.mxu0 %v557
        %710 = vmatprep.subr.mxu0 0.0
        %711 = vmatpush1.msra.mxu0 0.0
        %712 = vmatprep.subr.mxu0 0.0
        %713 = vmatpush1.msra.mxu0 0.0
        %714 = vmatprep.subr.mxu0 0.0
        %715 = vmatpush1.msra.mxu0 0.0
        %716 = vmatprep.subr.mxu0 0.0
        %717 = vmatpush1.msra.mxu0 0.0
        %718 = vmatprep.subr.mxu0 0.0
        %719 = vmatpush1.msra.mxu0 0.0
        %720 = vmatprep.subr.mxu0 0.0
        %721 = vmatpush1.msra.mxu0 0.0
        %722 = vmatprep.subr.mxu0 0.0
        %723 = vmatpush1.msra.mxu0 0.0
        %724 = vmatprep.subr.mxu0 0.0
        %725 = vmatpush1.msra.mxu0 0.0
        %726 = vmatprep.subr.mxu0 0.0
        %727 = vmatpush1.msra.mxu0 0.0
        %728 = vmatprep.subr.mxu0 0.0
        %729 = vmatpush1.msra.mxu0 0.0
        %730 = vmatprep.subr.mxu0 0.0
        %731 = vmatpush1.msra.mxu0 0.0
        %732 = vmatprep.subr.mxu0 0.0
        %733 = vmatpush1.msra.mxu0 0.0
        %734 = vmatprep.subr.mxu0 0.0
        %735 = vmatpush1.msra.mxu0 0.0
        %736 = vmatprep.subr.mxu0 0.0
        %737 = vmatpush1.msra.mxu0 0.0
        %738 = vmatprep.subr.mxu0 0.0
        %739 = vmatpush1.msra.mxu0 0.0
        %740 = vmatprep.subr.mxu0 0.0
        %741 = vmatpush1.msra.mxu0 0.0
        %742 = vmatprep.subr.mxu0 0.0
        %743 = vmatpush1.msra.mxu0 0.0
        %744 = vmatprep.subr.mxu0 0.0
        %745 = vmatpush1.msra.mxu0 0.0
        %746 = vmatprep.subr.mxu0 0.0
        %747 = vmatpush1.msra.mxu0 0.0
        %748 = vmatprep.subr.mxu0 0.0
        %749 = vmatpush1.msra.mxu0 0.0
        %750 = vmatprep.subr.mxu0 0.0
        %751 = vmatpush1.msra.mxu0 0.0
        %752 = vmatprep.subr.mxu0 0.0
        %753 = vmatpush1.msra.mxu0 0.0
        %754 = vmatprep.subr.mxu0 0.0
        %755 = vmatpush1.msra.mxu0 0.0
        %756 = vmatprep.subr.mxu0 0.0
        %757 = vmatpush1.msra.mxu0 0.0
        %758 = vmatprep.subr.mxu0 0.0
        %759 = vmatpush1.msra.mxu0 0.0
        %760 = vmatprep.subr.mxu0 0.0
        %761 = vmatpush1.msra.mxu0 0.0
        %762 = vmatprep.subr.mxu0 0.0
        %763 = vmatpush1.msra.mxu0 0.0
        %764 = vmatprep.subr.mxu0 0.0
        %765 = vmatpush1.msra.mxu0 0.0
        %766 = vmatprep.subr.mxu0 0.0
        %767 = vmatpush1.msra.mxu0 0.0
        %768 = vmatprep.subr.mxu0 0.0
        %769 = vmatpush1.msra.mxu0 0.0
        %770 = vmatprep.subr.mxu0 0.0
        %771 = vmatpush1.msra.mxu0 0.0
        %772 = vmatprep.mubr.f32.mxu0 0.0
        %773 = vmatmul.mubr.f32.gmra.mrb[0].mxu0 %v706
        %v774 = vpop.f32.mrb[0].mxu0
        %v775 = vadd.f32 0.0, %v774
        %v776 = vpop.f32.mrb[0].mxu0
        %v777 = vadd.f32 0.0, %v776
        %778 = vdwg.mxu0
        %v779 = vld [vmem:[%s5] sm:$0xff]
        %v780 = vld [vmem:[%s5 + $0x8] sm:$0xff]
        %v781 = vld [vmem:[%s5 + $0x10] sm:$0xff]
        %v782 = vld [vmem:[%s5 + $0x18] sm:$0xff]
        %v783 = vld [vmem:[%s5 + $0x20] sm:$0xff]
        %v784 = vld [vmem:[%s5 + $0x28] sm:$0xff]
        %v785 = vld [vmem:[%s5 + $0x30] sm:$0xff]
        %v786 = vld [vmem:[%s5 + $0x38] sm:$0xff]
        %v787 = vld [vmem:[%s5 + $0x40] sm:$0xff]
        %v788 = vld [vmem:[%s5 + $0x48] sm:$0xff]
        %v789 = vld [vmem:[%s5 + $0x50] sm:$0xff]
        %v790 = vld [vmem:[%s5 + $0x58] sm:$0xff]
        %v791 = vld [vmem:[%s5 + $0x60] sm:$0xff]
        %v792 = vld [vmem:[%s5 + $0x68] sm:$0xff]
        %v793 = vld [vmem:[%s5 + $0x70] sm:$0xff]
        %v794 = vld [vmem:[%s5 + $0x78] sm:$0xff]
        %v795 = vld [vmem:[%s5 + $0x80] sm:$0xff]
        %v796 = vld [vmem:[%s5 + $0x88] sm:$0xff]
        %v797 = vld [vmem:[%s5 + $0x90] sm:$0xff]
        %v798 = vld [vmem:[%s5 + $0x98] sm:$0xff]
        %v799 = vld [vmem:[%s5 + $0xa0] sm:$0xff]
        %v800 = vld [vmem:[%s5 + $0xa8] sm:$0xff]
        %v801 = vld [vmem:[%s5 + $0xb0] sm:$0xff]
        %v802 = vld [vmem:[%s5 + $0xb8] sm:$0xff]
        %v803 = vld [vmem:[%s5 + $0xc0] sm:$0xff]
        %v804 = vld [vmem:[%s5 + $0xc8] sm:$0xff]
        %v805 = vld [vmem:[%s5 + $0xd0] sm:$0xff]
        %v806 = vld [vmem:[%s5 + $0xd8] sm:$0xff]
        %v807 = vld [vmem:[%s5 + $0xe0] sm:$0xff]
        %v808 = vld [vmem:[%s5 + $0xe8] sm:$0xff]
        %v809 = vld [vmem:[%s5 + $0xf0] sm:$0xff]
        %v810 = vld [vmem:[%s5 + $0xf8] sm:$0xff]
        %v811 = vld [vmem:[%s6] sm:$0x1]
        %v813 = vlaneseq
        %v814 = vshrl.u32 %v813, 7
        %v815 = vsub.s32 0, %v814
        %v816 = vrot.slane %v811, %v815
        %818 = vmatprep.subr.mxu0 0.0
        %819 = vmatpush1.msra.mxu0 %v779
        %820 = vmatprep.subr.mxu0 0.0
        %821 = vmatpush1.msra.mxu0 %v780
        %822 = vmatprep.subr.mxu0 0.0
        %823 = vmatpush1.msra.mxu0 %v781
        %824 = vmatprep.subr.mxu0 0.0
        %825 = vmatpush1.msra.mxu0 %v782
        %826 = vmatprep.subr.mxu0 0.0
        %827 = vmatpush1.msra.mxu0 %v783
        %828 = vmatprep.subr.mxu0 0.0
        %829 = vmatpush1.msra.mxu0 %v784
        %830 = vmatprep.subr.mxu0 0.0
        %831 = vmatpush1.msra.mxu0 %v785
        %832 = vmatprep.subr.mxu0 0.0
        %833 = vmatpush1.msra.mxu0 %v786
        %834 = vmatprep.subr.mxu0 0.0
        %835 = vmatpush1.msra.mxu0 %v787
        %836 = vmatprep.subr.mxu0 0.0
        %837 = vmatpush1.msra.mxu0 %v788
        %838 = vmatprep.subr.mxu0 0.0
        %839 = vmatpush1.msra.mxu0 %v789
        %840 = vmatprep.subr.mxu0 0.0
        %841 = vmatpush1.msra.mxu0 %v790
        %842 = vmatprep.subr.mxu0 0.0
        %843 = vmatpush1.msra.mxu0 %v791
        %844 = vmatprep.subr.mxu0 0.0
        %845 = vmatpush1.msra.mxu0 %v792
        %846 = vmatprep.subr.mxu0 0.0
        %847 = vmatpush1.msra.mxu0 %v793
        %848 = vmatprep.subr.mxu0 0.0
        %849 = vmatpush1.msra.mxu0 %v794
        %850 = vmatprep.subr.mxu0 0.0
        %851 = vmatpush1.msra.mxu0 %v795
        %852 = vmatprep.subr.mxu0 0.0
        %853 = vmatpush1.msra.mxu0 %v796
        %854 = vmatprep.subr.mxu0 0.0
        %855 = vmatpush1.msra.mxu0 %v797
        %856 = vmatprep.subr.mxu0 0.0
        %857 = vmatpush1.msra.mxu0 %v798
        %858 = vmatprep.subr.mxu0 0.0
        %859 = vmatpush1.msra.mxu0 %v799
        %860 = vmatprep.subr.mxu0 0.0
        %861 = vmatpush1.msra.mxu0 %v800
        %862 = vmatprep.subr.mxu0 0.0
        %863 = vmatpush1.msra.mxu0 %v801
        %864 = vmatprep.subr.mxu0 0.0
        %865 = vmatpush1.msra.mxu0 %v802
        %866 = vmatprep.subr.mxu0 0.0
        %867 = vmatpush1.msra.mxu0 %v803
        %868 = vmatprep.subr.mxu0 0.0
        %869 = vmatpush1.msra.mxu0 %v804
        %870 = vmatprep.subr.mxu0 0.0
        %871 = vmatpush1.msra.mxu0 %v805
        %872 = vmatprep.subr.mxu0 0.0
        %873 = vmatpush1.msra.mxu0 %v806
        %874 = vmatprep.subr.mxu0 0.0
        %875 = vmatpush1.msra.mxu0 %v807
        %876 = vmatprep.subr.mxu0 0.0
        %877 = vmatpush1.msra.mxu0 %v808
        %878 = vmatprep.subr.mxu0 0.0
        %879 = vmatpush1.msra.mxu0 %v809
        %880 = vmatprep.subr.mxu0 0.0
        %881 = vmatpush1.msra.mxu0 %v810
        %882 = vmatprep.mubr.f32.mxu0 %v703
        %883 = vmatmul.mubr.f32.gmra.mrb[0].mxu0 %v701
        %v884 = vpop.f32.mrb[0].mxu0
        %v885 = vadd.f32 %v816, %v884
        %v886 = vpop.f32.mrb[0].mxu0
        %887 = vmatprep.mubr.f32.mxu0 %v777
        %888 = vmatmul.mubr.f32.gmra.mrb[0].mxu0 %v775
        %v889 = vpop.f32.mrb[0].mxu0
        %v890 = vadd.f32 %v816, %v889
        %v891 = vpop.f32.mrb[0].mxu0
        %892 = vdwg.mxu0
        %v893 = vmax.f32 %v885, 0.0
        %v894 = vmax.f32 %v890, 0.0
        %v895 = vld [vmem:[%s7] sm:$0xff]
        %v896 = vld [vmem:[%s7 + $0x8] sm:$0xff]
        %v897 = vld [vmem:[%s7 + $0x10] sm:$0xff]
        %v898 = vld [vmem:[%s7 + $0x18] sm:$0xff]
        %v899 = vld [vmem:[%s7 + $0x20] sm:$0xff]
        %v900 = vld [vmem:[%s7 + $0x28] sm:$0xff]
        %v901 = vld [vmem:[%s7 + $0x30] sm:$0xff]
        %v902 = vld [vmem:[%s7 + $0x38] sm:$0xff]
        %v903 = vld [vmem:[%s8] sm:$0x3]
        %v905 = vlaneseq
        %v906 = vshrl.u32 %v905, 7
        %v907 = vsub.s32 0, %v906
        %v908 = vrot.slane %v903, %v907
        %v909 = vlaneseq
        %v910 = vshrl.u32 %v909, 7
        %v911 = vsub.s32 1, %v910
        %v912 = vrot.slane %v903, %v911
        %v916 = vsel %vm477, %v893, 0
        %v919 = vsel %vm477, %v894, 0
        %921 = vmatprep.subr.mxu0 %v896
        %922 = vmatpush1.msra.mxu0 %v895
        %923 = vmatprep.subr.mxu0 %v898
        %924 = vmatpush1.msra.mxu0 %v897
        %925 = vmatprep.subr.mxu0 %v900
        %926 = vmatpush1.msra.mxu0 %v899
        %927 = vmatprep.subr.mxu0 %v902
        %928 = vmatpush1.msra.mxu0 %v901
        %929 = vmatprep.subr.mxu0 0.0
        %930 = vmatpush1.msra.mxu0 0.0
        %931 = vmatprep.subr.mxu0 0.0
        %932 = vmatpush1.msra.mxu0 0.0
        %933 = vmatprep.subr.mxu0 0.0
        %934 = vmatpush1.msra.mxu0 0.0
        %935 = vmatprep.subr.mxu0 0.0
        %936 = vmatpush1.msra.mxu0 0.0
        %937 = vmatprep.subr.mxu0 0.0
        %938 = vmatpush1.msra.mxu0 0.0
        %939 = vmatprep.subr.mxu0 0.0
        %940 = vmatpush1.msra.mxu0 0.0
        %941 = vmatprep.subr.mxu0 0.0
        %942 = vmatpush1.msra.mxu0 0.0
        %943 = vmatprep.subr.mxu0 0.0
        %944 = vmatpush1.msra.mxu0 0.0
        %945 = vmatprep.subr.mxu0 0.0
        %946 = vmatpush1.msra.mxu0 0.0
        %947 = vmatprep.subr.mxu0 0.0
        %948 = vmatpush1.msra.mxu0 0.0
        %949 = vmatprep.subr.mxu0 0.0
        %950 = vmatpush1.msra.mxu0 0.0
        %951 = vmatprep.subr.mxu0 0.0
        %952 = vmatpush1.msra.mxu0 0.0
        %953 = vmatprep.subr.mxu0 0.0
        %954 = vmatpush1.msra.mxu0 0.0
        %955 = vmatprep.subr.mxu0 0.0
        %956 = vmatpush1.msra.mxu0 0.0
        %957 = vmatprep.subr.mxu0 0.0
        %958 = vmatpush1.msra.mxu0 0.0
        %959 = vmatprep.subr.mxu0 0.0
        %960 = vmatpush1.msra.mxu0 0.0
        %961 = vmatprep.subr.mxu0 0.0
        %962 = vmatpush1.msra.mxu0 0.0
        %963 = vmatprep.subr.mxu0 0.0
        %964 = vmatpush1.msra.mxu0 0.0
        %965 = vmatprep.subr.mxu0 0.0
        %966 = vmatpush1.msra.mxu0 0.0
        %967 = vmatprep.subr.mxu0 0.0
        %968 = vmatpush1.msra.mxu0 0.0
        %969 = vmatprep.subr.mxu0 0.0
        %970 = vmatpush1.msra.mxu0 0.0
        %971 = vmatprep.subr.mxu0 0.0
        %972 = vmatpush1.msra.mxu0 0.0
        %973 = vmatprep.subr.mxu0 0.0
        %974 = vmatpush1.msra.mxu0 0.0
        %975 = vmatprep.subr.mxu0 0.0
        %976 = vmatpush1.msra.mxu0 0.0
        %977 = vmatprep.subr.mxu0 0.0
        %978 = vmatpush1.msra.mxu0 0.0
        %979 = vmatprep.subr.mxu0 0.0
        %980 = vmatpush1.msra.mxu0 0.0
        %981 = vmatprep.subr.mxu0 0.0
        %982 = vmatpush1.msra.mxu0 0.0
        %983 = vmatprep.subr.mxu0 0.0
        %984 = vmatpush1.msra.mxu0 0.0
        %985 = vmatprep.mubr.f32.mxu0 0.0
        %986 = vmatmul.mubr.f32.gmra.mrb[0].mxu0 %v916
        %v987 = vpop.f32.mrb[0].mxu0
        %v988 = vadd.f32 %v908, %v987
        %v989 = vpop.f32.mrb[0].mxu0
        %v990 = vadd.f32 %v912, %v989
        %991 = vmatprep.mubr.f32.mxu0 0.0
        %992 = vmatmul.mubr.f32.gmra.mrb[0].mxu0 %v919
        %v993 = vpop.f32.mrb[0].mxu0
        %v994 = vadd.f32 %v908, %v993
        %v995 = vpop.f32.mrb[0].mxu0
        %v996 = vadd.f32 %v912, %v995
        %997 = vdwg.mxu0
        %v998 = vadd.f32 %v337, %v988
        %v999 = vadd.f32 %v338, %v990
        %v1000 = vadd.f32 %v339, %v994
        %v1001 = vadd.f32 %v340, %v996
        %v1002 = vmax.f32 %v998, 0.0
        %v1003 = vmax.f32 %v999, 0.0
        %v1004 = vmax.f32 %v1000, 0.0
        %v1005 = vmax.f32 %v1001, 0.0
        %1006 = vst [vmem:[%s328] sm:$0xff] %v1002
        %1007 = vst [vmem:[%s328 + $0x8] sm:$0xff] %v1003
        %1008 = vst [vmem:[%s328 + $0x10] sm:$0xff] %v1004
        %1009 = vst [vmem:[%s328 + $0x18] sm:$0xff] %v1005
        %s1010 = sand.u32 %s225, 1
        %s1011 = scalar_lea.sflag [#allocation3], %s1010
        %s1012 = sand.u32 %s225, 1
        %s1013 = smul.addr %s1012, 32
        %s1014 = scalar_lea.vmem [#allocation2], %s1013
        // Predicated region
        $region57: #{tpu_custom_call.1} parent=55 // pred_check
          %p1015 = pneg %p235
        $region58: #{tpu_custom_call.1} parent=55 // pred_check_branch
          %1017 = sbr.rel (%p1015) target = $region60
        $region59: #{tpu_custom_call.1} parent=55 // pred_region
          %s1018 = smul.u32 2, %s23
          %s1020 = ssub.s32 512, 512
          %1021 = vsyncadd %s1011, %s1020
          %s1022 = smul.addr %s1018, 2
          %s1023 = smul.addr %s1022, 128
          %s1024 = scalar_lea.hbm %s9, %s1023
          %s1025 = sshll.u32 %s1014, 4
          %s1026 = int_to_ptr.vmem [resolvable:$true] %s1025
          %1031 = dma.vmem_to_hbm [thread:$0]  %s1026, 512, %s1024, %s1011, 256, 256, 16
        $region60: #{tpu_custom_call.1} parent=55 // pred_fallthru
          _
      $region56: #{tpu_custom_call.1} parent=5 // pred_fallthru
        _
      %p1032 = scmp.le.s32.totalorder 2, %s18
      // Predicated region
      $region61: #{tpu_custom_call.1} parent=5 // pred_check
        %p1033 = pneg %p1032
      $region62: #{tpu_custom_call.1} parent=5 // pred_check_branch
        %1035 = sbr.rel (%p1033) target = $region64
      $region63: #{tpu_custom_call.1} parent=5 // pred_region
        %s1036 = ssub.s32 %s18, 2
        // Predicated region
        $region65: #{tpu_custom_call.1} parent=63 // pred_check
          %p1037 = pneg %p241
        $region66: #{tpu_custom_call.1} parent=63 // pred_check_branch
          %1039 = sbr.rel (%p1037) target = $region68
        $region67: #{tpu_custom_call.1} parent=63 // pred_region
          %s1040 = sand.u32 %s226, 1
          %s1041 = scalar_lea.sflag [#allocation3], %s1040
          %s1042 = sand.u32 %s226, 1
          %s1043 = smul.addr %s1042, 32
          %s1044 = scalar_lea.vmem [#allocation2], %s1043
          %1045 = dma.done %s1041, 512
        $region68: #{tpu_custom_call.1} parent=63 // pred_fallthru
          _
      $region64: #{tpu_custom_call.1} parent=5 // pred_fallthru
        _
    $region6: #{tpu_custom_call.1} parent=1 // loop_footer
      %s22 = sadd.s32 1, %s18
    $region7: #{tpu_custom_call.1} parent=1 // loop_footer_branch
      %17 = sbr.rel target = $region3
    $region8: #{tpu_custom_call.1} parent=1 // loop_exit
      _
    %1046 = vsyncpa [#allocation3], 1
    %s1047 = scalar_lea.sflag [#allocation3], 1
    %1048 = vsyncpa %s1047, 1

</llo_original>
